<compile_context>
chip_gen: v7x
topology: tpu7x:2x2x1
jax: 0.10.0
libtpu: 0.0.40
codegen_flags: <defaults>
</compile_context>

<pallas_src>
import jax
import jax.numpy as jnp
from jax.experimental import pallas as pl
from jax.experimental.pallas import tpu as pltpu


# ----------------------------------------------------------------------------
# Utilities
# ----------------------------------------------------------------------------
def _round_up(x, m):
    return ((x + m - 1) // m) * m


def _choose_tile_m(m):
    for t in (256, 128):
        if m % t == 0:
            return t
    if m >= 256:
        return 256
    return _round_up(m, 8)


# ----------------------------------------------------------------------------
# Pallas kernel 1: fused (im2col-matmul + BN-shift [+ residual] [relu])
#   - bf16 operands, f32 MXU accumulation, f32 epilogue, bf16 output
#   - BN scale already folded into the weights
#   - grid over (M tiles, N tiles); full K per block (resident per grid step)
# ----------------------------------------------------------------------------
def _fused_matmul_bn(x, w, shift, residual=None, relu=True):
    """x: (M, K) bf16; w: (K_pad, N_pad) bf16 pre-padded; shift: (1, N_pad) f32;
    residual: (M, N_pad) bf16 or None.  Returns (M, N_pad) bf16."""
    M, K = x.shape
    K_pad, N_pad = w.shape
    assert K <= K_pad and K_pad % 128 == 0 and N_pad % 128 == 0

    TM = _choose_tile_m(M)
    TN = 128 if N_pad == 128 else 256
    M_pad = _round_up(M, TM)

    x_p = x
    if M_pad != M or K_pad != K:
        # Only the 7x7 stem (K=147) and small M remainders ever hit this pad.
        x_p = jnp.pad(x, ((0, M_pad - M), (0, K_pad - K)))

    has_res = residual is not None
    grid = (M_pad // TM, N_pad // TN)

    def kernel(*refs):
        if has_res:
            x_ref, w_ref, sh_ref, r_ref, o_ref = refs
        else:
            x_ref, w_ref, sh_ref, o_ref = refs
        y = jnp.dot(x_ref[...], w_ref[...], preferred_element_type=jnp.float32)
        y = y + sh_ref[...]
        if has_res:
            y = y + r_ref[...].astype(jnp.float32)
        if relu:
            y = jnp.maximum(y, 0.0)
        o_ref[...] = y.astype(o_ref.dtype)

    in_specs = [
        pl.BlockSpec((TM, K_pad), lambda i, j: (i, 0)),   # activations: full K
        pl.BlockSpec((K_pad, TN), lambda i, j: (0, j)),   # weights: full K, N tiled
        pl.BlockSpec((1, TN), lambda i, j: (0, j)),       # folded BN shift
    ]
    inputs = [x_p, w, shift]
    if has_res:
        r_p = residual
        if M_pad != M:
            r_p = jnp.pad(residual, ((0, M_pad - M), (0, 0)))
        in_specs.append(pl.BlockSpec((TM, TN), lambda i, j: (i, j)))
        inputs.append(r_p)

    out = pl.pallas_call(
        kernel,
        out_shape=jax.ShapeDtypeStruct((M_pad, N_pad), jnp.bfloat16),
        grid=grid,
        in_specs=in_specs,
        out_specs=pl.BlockSpec((TM, TN), lambda i, j: (i, j)),
        compiler_params=pltpu.CompilerParams(
            dimension_semantics=("parallel", "parallel")
        ),
    )(*inputs)
    return out[:M]


# ----------------------------------------------------------------------------
# Pallas kernel 2: 3x3/stride-2/pad-1 max-pool, tiled over output rows so the
# block always fits VMEM (the previous single-block version OOMs at real sizes)
# ----------------------------------------------------------------------------
def _maxpool_kernel(x_ref, o_ref):
    o_ref[...] = jnp.max(x_ref[...], axis=0)


def _maxpool_3x3_s2_p1(x_nhwc):
    n, h, w, c = x_nhwc.shape
    k, s, p = 3, 2, 1
    ho = (h + 2 * p - k) // s + 1
    wo = (w + 2 * p - k) // s + 1
    xp = jnp.pad(
        x_nhwc, ((0, 0), (p, p), (p, p), (0, 0)), constant_values=-jnp.inf
    )
    taps = []
    for i in range(k):
        for j in range(k):
            taps.append(xp[:, i : i + s * ho : s, j : j + s * wo : s, :])
    m = n * ho * wo
    stacked = jnp.stack(taps, axis=0).reshape(k * k, m, c)

    tm = 512 if m > 512 else _round_up(m, 8)
    m_pad = _round_up(m, tm)
    if m_pad != m:
        stacked = jnp.pad(
            stacked, ((0, 0), (0, m_pad - m), (0, 0)), constant_values=-jnp.inf
        )

    out = pl.pallas_call(
        _maxpool_kernel,
        out_shape=jax.ShapeDtypeStruct((m_pad, c), x_nhwc.dtype),
        grid=(m_pad // tm,),
        in_specs=[pl.BlockSpec((k * k, tm, c), lambda i: (0, i, 0))],
        out_specs=pl.BlockSpec((tm, c), lambda i: (i, 0)),
        compiler_params=pltpu.CompilerParams(dimension_semantics=("parallel",)),
    )(stacked)
    return out[:m].reshape(n, ho, wo, c)


# ----------------------------------------------------------------------------
# Convolution = im2col (JAX glue; identity for 1x1) + Pallas fused matmul
# ----------------------------------------------------------------------------
def _im2col(x_nhwc, kh, kw, stride, pad):
    n, h, w, c = x_nhwc.shape
    ho = (h + 2 * pad - kh) // stride + 1
    wo = (w + 2 * pad - kw) // stride + 1
    if kh == 1 and kw == 1 and pad == 0:
        xs = x_nhwc if stride == 1 else x_nhwc[:, ::stride, ::stride, :]
        return xs.reshape(n * ho * wo, c), (n, ho, wo)
    xp = jnp.pad(x_nhwc, ((0, 0), (pad, pad), (pad, pad), (0, 0)))
    patches = []
    for i in range(kh):
        for j in range(kw):
            patches.append(
                xp[:, i : i + stride * ho : stride, j : j + stride * wo : stride, :]
            )
    cols = jnp.concatenate(patches, axis=-1)  # (n, ho, wo, kh*kw*c)
    return cols.reshape(n * ho * wo, kh * kw * c), (n, ho, wo)


def _conv_bn(x_nhwc, cp, stride, pad, relu=True, residual=None):
    cols, (n, ho, wo) = _im2col(x_nhwc, cp["kh"], cp["kw"], stride, pad)
    cout_pad = cp["w"].shape[1]
    res_flat = None
    if residual is not None:
        res_flat = residual.reshape(-1, cout_pad)
    out = _fused_matmul_bn(cols, cp["w"], cp["shift"], residual=res_flat, relu=relu)
    return out.reshape(n, ho, wo, cout_pad)


# ----------------------------------------------------------------------------
# Parameter preparation (deterministic; eval-mode BN scale folded into weights,
# channels zero-padded to multiples of 128, reshaped to matmul form, bf16)
# ----------------------------------------------------------------------------
def _prep_conv_bn(key, kh, kw, cin, cout, cin_pad, cout_pad):
    k1, k2, k3, k4, k5 = jax.random.split(key, 5)
    fan_in = kh * kw * cin
    w = jax.random.normal(k1, (kh, kw, cin, cout), jnp.float32) * (2.0 / fan_in) ** 0.5
    gamma = jax.random.uniform(k2, (cout,), jnp.float32, 0.5, 1.5)
    beta = jax.random.normal(k3, (cout,), jnp.float32) * 0.1
    mean = jax.random.normal(k4, (cout,), jnp.float32) * 0.1
    var = jax.random.uniform(k5, (cout,), jnp.float32, 0.5, 1.5)
    scale = gamma / jnp.sqrt(var + 1e-5)
    shift = beta - mean * scale

    w = w * scale[None, None, None, :]  # fold BN scale into weights
    w = jnp.pad(w, ((0, 0), (0, 0), (0, cin_pad - cin), (0, cout_pad - cout)))
    w2 = w.reshape(kh * kw * cin_pad, cout_pad)
    k_pad = _round_up(w2.shape[0], 128)
    if k_pad != w2.shape[0]:
        w2 = jnp.pad(w2, ((0, k_pad - w2.shape[0]), (0, 0)))
    shift2 = jnp.pad(shift, (0, cout_pad - cout)).reshape(1, cout_pad)
    return {
        "kh": kh,
        "kw": kw,
        "w": w2.astype(jnp.bfloat16),
        "shift": shift2.astype(jnp.float32),
    }


def _init_bottleneck(key, cin, cin_pad, planes, stride):
    ks = jax.random.split(key, 4)
    planes_pad = _round_up(planes, 128)
    out_pad = _round_up(planes * 4, 128)
    blk = {
        "stride": stride,  # python int (static)
        "conv1": _prep_conv_bn(ks[0], 1, 1, cin, planes, cin_pad, planes_pad),
        "conv2": _prep_conv_bn(ks[1], 3, 3, planes, planes, planes_pad, planes_pad),
        "conv3": _prep_conv_bn(ks[2], 1, 1, planes, planes * 4, planes_pad, out_pad),
    }
    if stride != 1 or cin != planes * 4:
        blk["downsample"] = _prep_conv_bn(ks[3], 1, 1, cin, planes * 4, cin_pad, out_pad)
    return blk


def init_resnet50_encoder(key, in_channels=3, conv1_out=64):
    keys = jax.random.split(key, 4)
    conv1_pad = _round_up(conv1_out, 128)
    params = {
        "conv1": _prep_conv_bn(keys[0], 7, 7, in_channels, conv1_out,
                               in_channels, conv1_pad)
    }

    def make_layer(k, cin, cin_pad, planes, blocks, stride):
        ks = jax.random.split(k, blocks)
        layer = []
        c, cp = cin, cin_pad
        for i in range(blocks):
            layer.append(_init_bottleneck(ks[i], c, cp, planes, stride if i == 0 else 1))
            c, cp = planes * 4, _round_up(planes * 4, 128)
        return layer, c, cp

    layer1, c, cp = make_layer(keys[1], conv1_out, conv1_pad, 64, 3, 1)
    layer2, c, cp = make_layer(keys[2], c, cp, 128, 4, 2)
    layer3, c, cp = make_layer(keys[3], c, cp, 256, 6, 2)
    params["layer1"] = layer1
    params["layer2"] = layer2
    params["layer3"] = layer3
    params["out_channels"] = c
    return params


# ----------------------------------------------------------------------------
# Forward pass (matches the PyTorch module's forward up through layer3)
# ----------------------------------------------------------------------------
def _bottleneck_forward(x, blk):
    identity = x
    out = _conv_bn(x, blk["conv1"], stride=1, pad=0, relu=True)
    out = _conv_bn(out, blk["conv2"], stride=blk["stride"], pad=1, relu=True)
    if "downsample" in blk:
        identity = _conv_bn(x, blk["downsample"], stride=blk["stride"], pad=0, relu=False)
    # conv3 + BN + residual add + relu, fused in one Pallas call
    out = _conv_bn(out, blk["conv3"], stride=1, pad=0, relu=True, residual=identity)
    return out


def resnet_encoder_forward(x_nchw, params):
    # Input NCHW (PyTorch); compute in NHWC bf16 with 128-padded channels; output NCHW f32.
    x = jnp.transpose(x_nchw, (0, 2, 3, 1)).astype(jnp.bfloat16)
    x = _conv_bn(x, params["conv1"], stride=2, pad=3, relu=True)  # conv1 + bn1 + relu
    x = _maxpool_3x3_s2_p1(x)                                      # maxpool
    for blk in params["layer1"]:
        x = _bottleneck_forward(x, blk)
    for blk in params["layer2"]:
        x = _bottleneck_forward(x, blk)
    for blk in params["layer3"]:
        x = _bottleneck_forward(x, blk)
    x = x[..., : params["out_channels"]].astype(jnp.float32)
    return jnp.transpose(x, (0, 3, 1, 2))


# ----------------------------------------------------------------------------
# Main
# ----------------------------------------------------------------------------
if __name__ == "__main__":
    key = jax.random.PRNGKey(0)
    kx, kp = jax.random.split(key)

    # Small shapes consistent with the module: N=2, C=3 (RGB), H=W=16.
    x = jax.random.normal(kx, (2, 3, 16, 16), jnp.float32)
    params = init_resnet50_encoder(kp, in_channels=3, conv1_out=64)

    out = resnet_encoder_forward(x, params)
    out = jax.block_until_ready(out)

    # ResNet-50 through layer3: 1024 channels, spatial /16 -> (2, 1024, 1, 1)
    assert out.shape == (2, 1024, 1, 1), out.shape
    assert out.dtype == jnp.float32
    assert bool(jnp.all(jnp.isfinite(out)))

    print("KERNEL_OK")
</pallas_src>

<mosaic_0001>
module attributes {stable_mosaic.version = 11 : i64} {
  func.func @kernel(%arg0: i32, %arg1: i32, %arg2: memref<128x256xbf16, #tpu.memory_space<vmem>>, %arg3: memref<256x128xbf16, #tpu.memory_space<vmem>>, %arg4: memref<1x128xf32, #tpu.memory_space<vmem>>, %arg5: memref<128x128xbf16, #tpu.memory_space<vmem>>) attributes {dimension_semantics = [#tpu.dimension_semantics<parallel>, #tpu.dimension_semantics<parallel>], iteration_bounds = array<i64: 1, 1>, scalar_prefetch = 0 : i64, scratch_operands = 0 : i64, tpu.core_type = #tpu.core_type<tc>, window_params = [{transform_indices = @transform_0, window_bounds = array<i64: 128, 256>}, {transform_indices = @transform_1, window_bounds = array<i64: 256, 128>}, {transform_indices = @transform_2, window_bounds = array<i64: 1, 128>}, {transform_indices = @transform_3, window_bounds = array<i64: 128, 128>}]} {
    %c0 = arith.constant 0 : index
    %c0_0 = arith.constant 0 : index
    %0 = vector.load %arg2[%c0, %c0_0] : memref<128x256xbf16, #tpu.memory_space<vmem>>, vector<128x256xbf16>
    %c0_1 = arith.constant 0 : index
    %c0_2 = arith.constant 0 : index
    %1 = vector.load %arg3[%c0_1, %c0_2] : memref<256x128xbf16, #tpu.memory_space<vmem>>, vector<256x128xbf16>
    %cst = arith.constant dense<0.000000e+00> : vector<128x128xf32>
    %2 = tpu.matmul %0, %1, %cst {dimension_numbers = #tpu.dot_dimension_numbers<[1], [0], [0], [1], [0, 0, 1, 1], [], []>} : vector<128x256xbf16>, vector<256x128xbf16>, vector<128x128xf32> -> vector<128x128xf32>
    %c0_3 = arith.constant 0 : index
    %c0_4 = arith.constant 0 : index
    %3 = vector.load %arg4[%c0_3, %c0_4] : memref<1x128xf32, #tpu.memory_space<vmem>>, vector<1x128xf32>
    %4 = vector.broadcast %3 : vector<1x128xf32> to vector<128x128xf32>
    %5 = arith.addf %2, %4 : vector<128x128xf32>
    %cst_5 = arith.constant 0.000000e+00 : f32
    %6 = vector.broadcast %cst_5 : f32 to vector<128x128xf32>
    %7 = arith.maximumf %5, %6 : vector<128x128xf32>
    %8 = arith.truncf %7 : vector<128x128xf32> to vector<128x128xbf16>
    %c0_6 = arith.constant 0 : index
    %c0_7 = arith.constant 0 : index
    %9 = vector.load %arg5[%c0_6, %c0_7] : memref<128x128xbf16, #tpu.memory_space<vmem>>, vector<128x128xbf16>
    tpu.vector_store %arg5[%c0_6, %c0_7], %8 {strides = array<i32>} : memref<128x128xbf16, #tpu.memory_space<vmem>>, vector<128x128xbf16>,
    return
  }
  func.func @transform_0(%arg0: i32, %arg1: i32) -> (i32, i32) {
    %c0_i32 = arith.constant 0 : i32
    %c0_i32_0 = arith.constant 0 : i32
    return %arg0, %c0_i32 : i32, i32
  }
  func.func @transform_1(%arg0: i32, %arg1: i32) -> (i32, i32) {
    %c0_i32 = arith.constant 0 : i32
    %c0_i32_0 = arith.constant 0 : i32
    return %c0_i32, %arg1 : i32, i32
  }
  func.func @transform_2(%arg0: i32, %arg1: i32) -> (i32, i32) {
    %c0_i32 = arith.constant 0 : i32
    %c0_i32_0 = arith.constant 0 : i32
    return %c0_i32, %arg1 : i32, i32
  }
  func.func @transform_3(%arg0: i32, %arg1: i32) -> (i32, i32) {
    %c0_i32 = arith.constant 0 : i32
    return %arg0, %arg1 : i32, i32
  }
}

</mosaic_0001>

<llo_original>
// kernel: tpu_custom_call.1
$region0: #{tpu_custom_call.1}
  #allocation0 [shape = 'u32[]', space=smem, size = 0x4, offset = 0x4, fixed_abs, tag = 'smem constant byte address 0x4 - core index']
  #allocation1 [shape = 'u32[144,128]{1,0:T(1,128)}', space=vmem, size = 0x12000, scoped, tag = 'internal scratch']
  %s0 = inlined_call_operand.hbm [shape: bf16[128,256], index: 0, kind: input, shape index: {}]
  %s1 = inlined_call_operand.hbm [shape: bf16[256,128], index: 1, kind: input, shape index: {}]
  %s2 = inlined_call_operand.vmem [shape: f32[1,128], index: 2, kind: input, shape index: {}]
  %s3 = inlined_call_operand.hbm [shape: bf16[128,128], index: 3, kind: output, shape index: {}]
  %s4 = sld [smem:[#allocation0]]
  $region30: #{tpu_custom_call.1} parent=0
    _
  %s6 = ssub.s32 1, %s4
  %s7 = scalar_select 0, %s6, %s4
  $region1: #{tpu_custom_call.1} parent=0
    #allocation2 [shape = 'u8[65536]{0}', space=vmem, size = 0x10000, scoped, tag = 'input window, operand 0, single buffered']
    #allocation3 [shape = 's32[1]{0}', space=sflag, size = 0x4, scoped, tag = 'scoped memory for tpu_custom_call.1']
    #allocation4 [shape = 's32[1]{0}', space=sflag, size = 0x4, scoped, tag = 'scoped memory for tpu_custom_call.1']
    #allocation5 [shape = 'u8[65536]{0}', space=vmem, size = 0x10000, scoped, tag = 'input window, operand 1, single buffered']
    #allocation6 [shape = 's32[1]{0}', space=sflag, size = 0x4, scoped, tag = 'scoped memory for tpu_custom_call.1']
    #allocation7 [shape = 'u8[32768]{0}', space=vmem, size = 0x8000, scoped, tag = 'output window, operand 0, single buffered']
    %8 = vsyncpa [#allocation3], 0
    %9 = vsyncpa [#allocation6], 0
    %10 = vsyncpa [#allocation4], 0
    // Predicated region
    $region2: #{tpu_custom_call.1} parent=1 // pred_check
      _
    $region3: #{tpu_custom_call.1} parent=1 // pred_check_branch
      %12 = sbr.rel (0) target = $region5
    $region4: #{tpu_custom_call.1} parent=1 // pred_region
      %s14 = ssub.s32 2048, 2048
      %15 = vsyncadd [#allocation3], %s14
      %s16 = sshll.u32 [#allocation2], 4
      %s17 = int_to_ptr.vmem [resolvable:$true] %s16
      %22 = dma.hbm_to_vmem [thread:$0]  %s0, 2048, %s17, [#allocation3], 128, 128, 8
    $region5: #{tpu_custom_call.1} parent=1 // pred_fallthru
      _
    // Predicated region
    $region6: #{tpu_custom_call.1} parent=1 // pred_check
      _
    $region7: #{tpu_custom_call.1} parent=1 // pred_check_branch
      %24 = sbr.rel (0) target = $region9
    $region8: #{tpu_custom_call.1} parent=1 // pred_region
      %s26 = ssub.s32 2048, 2048
      %27 = vsyncadd [#allocation6], %s26
      %s28 = sshll.u32 [#allocation5], 4
      %s29 = int_to_ptr.vmem [resolvable:$true] %s28
      %34 = dma.hbm_to_vmem [thread:$0]  %s1, 2048, %s29, [#allocation6], 64, 64, 4
    $region9: #{tpu_custom_call.1} parent=1 // pred_fallthru
      _
    // Predicated region
    $region10: #{tpu_custom_call.1} parent=1 // pred_check
      _
    $region11: #{tpu_custom_call.1} parent=1 // pred_check_branch
      %36 = sbr.rel (0) target = $region13
    $region12: #{tpu_custom_call.1} parent=1 // pred_region
      _
    $region13: #{tpu_custom_call.1} parent=1 // pred_fallthru
      _
    // Predicated region
    $region14: #{tpu_custom_call.1} parent=1 // pred_check
      _
    $region15: #{tpu_custom_call.1} parent=1 // pred_check_branch
      %38 = sbr.rel (0) target = $region17
    $region16: #{tpu_custom_call.1} parent=1 // pred_region
      %39 = dma.done [#allocation3], 2048
    $region17: #{tpu_custom_call.1} parent=1 // pred_fallthru
      _
    // Predicated region
    $region18: #{tpu_custom_call.1} parent=1 // pred_check
      _
    $region19: #{tpu_custom_call.1} parent=1 // pred_check_branch
      %41 = sbr.rel (0) target = $region21
    $region20: #{tpu_custom_call.1} parent=1 // pred_region
      %42 = dma.done [#allocation6], 2048
    $region21: #{tpu_custom_call.1} parent=1 // pred_fallthru
      _
    %v44 = vld [vmem:[#allocation2] sm:$0xff]
    %v45 = vld [vmem:[#allocation2 + $0x8] sm:$0xff]
    %v46 = vld [vmem:[#allocation2 + $0x10] sm:$0xff]
    %v47 = vld [vmem:[#allocation2 + $0x18] sm:$0xff]
    %v48 = vld [vmem:[#allocation2 + $0x20] sm:$0xff]
    %v49 = vld [vmem:[#allocation2 + $0x28] sm:$0xff]
    %v50 = vld [vmem:[#allocation2 + $0x30] sm:$0xff]
    %v51 = vld [vmem:[#allocation2 + $0x38] sm:$0xff]
    %v52 = vld [vmem:[#allocation2 + $0x40] sm:$0xff]
    %v53 = vld [vmem:[#allocation2 + $0x48] sm:$0xff]
    %v54 = vld [vmem:[#allocation2 + $0x50] sm:$0xff]
    %v55 = vld [vmem:[#allocation2 + $0x58] sm:$0xff]
    %v56 = vld [vmem:[#allocation2 + $0x60] sm:$0xff]
    %v57 = vld [vmem:[#allocation2 + $0x68] sm:$0xff]
    %v58 = vld [vmem:[#allocation2 + $0x70] sm:$0xff]
    %v59 = vld [vmem:[#allocation2 + $0x78] sm:$0xff]
    %v60 = vld [vmem:[#allocation5] sm:$0xf]
    %v61 = vld [vmem:[#allocation5 + $0x4] sm:$0xf]
    %v62 = vld [vmem:[#allocation5 + $0x8] sm:$0xf]
    %v63 = vld [vmem:[#allocation5 + $0xc] sm:$0xf]
    %v64 = vld [vmem:[#allocation5 + $0x10] sm:$0xf]
    %v65 = vld [vmem:[#allocation5 + $0x14] sm:$0xf]
    %v66 = vld [vmem:[#allocation5 + $0x18] sm:$0xf]
    %v67 = vld [vmem:[#allocation5 + $0x1c] sm:$0xf]
    %v68 = vld [vmem:[#allocation5 + $0x20] sm:$0xf]
    %v69 = vld [vmem:[#allocation5 + $0x24] sm:$0xf]
    %v70 = vld [vmem:[#allocation5 + $0x28] sm:$0xf]
    %v71 = vld [vmem:[#allocation5 + $0x2c] sm:$0xf]
    %v72 = vld [vmem:[#allocation5 + $0x30] sm:$0xf]
    %v73 = vld [vmem:[#allocation5 + $0x34] sm:$0xf]
    %v74 = vld [vmem:[#allocation5 + $0x38] sm:$0xf]
    %v75 = vld [vmem:[#allocation5 + $0x3c] sm:$0xf]
    %v76 = vld [vmem:[#allocation5 + $0x40] sm:$0xf]
    %v77 = vld [vmem:[#allocation5 + $0x44] sm:$0xf]
    %v78 = vld [vmem:[#allocation5 + $0x48] sm:$0xf]
    %v79 = vld [vmem:[#allocation5 + $0x4c] sm:$0xf]
    %v80 = vld [vmem:[#allocation5 + $0x50] sm:$0xf]
    %v81 = vld [vmem:[#allocation5 + $0x54] sm:$0xf]
    %v82 = vld [vmem:[#allocation5 + $0x58] sm:$0xf]
    %v83 = vld [vmem:[#allocation5 + $0x5c] sm:$0xf]
    %v84 = vld [vmem:[#allocation5 + $0x60] sm:$0xf]
    %v85 = vld [vmem:[#allocation5 + $0x64] sm:$0xf]
    %v86 = vld [vmem:[#allocation5 + $0x68] sm:$0xf]
    %v87 = vld [vmem:[#allocation5 + $0x6c] sm:$0xf]
    %v88 = vld [vmem:[#allocation5 + $0x70] sm:$0xf]
    %v89 = vld [vmem:[#allocation5 + $0x74] sm:$0xf]
    %v90 = vld [vmem:[#allocation5 + $0x78] sm:$0xf]
    %v91 = vld [vmem:[#allocation5 + $0x7c] sm:$0xf]
    %v92 = vld [vmem:[%s2] sm:$0x1]
    %v94 = vlaneseq
    %v95 = vshrl.u32 %v94, 7
    %v96 = vsub.s32 0, %v95
    %v97 = vrot.slane %v92, %v96
    %v115 = vunpack.c.l.b16 %v44
    %v116 = vunpack.c.h.b16 %v44
    %v117 = vunpack.c.l.b16 %v45
    %v118 = vunpack.c.h.b16 %v45
    %v119 = vunpack.c.l.b16 %v46
    %v120 = vunpack.c.h.b16 %v46
    %v121 = vunpack.c.l.b16 %v47
    %v122 = vunpack.c.h.b16 %v47
    %v123 = vunpack.c.l.b16 %v48
    %v124 = vunpack.c.h.b16 %v48
    %v125 = vunpack.c.l.b16 %v49
    %v126 = vunpack.c.h.b16 %v49
    %v127 = vunpack.c.l.b16 %v50
    %v128 = vunpack.c.h.b16 %v50
    %v129 = vunpack.c.l.b16 %v51
    %v130 = vunpack.c.h.b16 %v51
    %v131 = vunpack.c.l.b16 %v52
    %v132 = vunpack.c.h.b16 %v52
    %v133 = vunpack.c.l.b16 %v53
    %v134 = vunpack.c.h.b16 %v53
    %v135 = vunpack.c.l.b16 %v54
    %v136 = vunpack.c.h.b16 %v54
    %v137 = vunpack.c.l.b16 %v55
    %v138 = vunpack.c.h.b16 %v55
    %v139 = vunpack.c.l.b16 %v56
    %v140 = vunpack.c.h.b16 %v56
    %v141 = vunpack.c.l.b16 %v57
    %v142 = vunpack.c.h.b16 %v57
    %v143 = vunpack.c.l.b16 %v58
    %v144 = vunpack.c.h.b16 %v58
    %v145 = vunpack.c.l.b16 %v59
    %v146 = vunpack.c.h.b16 %v59
    %v147 = vpack.c.b16 %v117, %v115
    %v148 = vpack.c.b16 %v118, %v116
    %v149 = vpack.c.b16 %v121, %v119
    %v150 = vpack.c.b16 %v122, %v120
    %v151 = vpack.c.b16 %v125, %v123
    %v152 = vpack.c.b16 %v126, %v124
    %v153 = vpack.c.b16 %v129, %v127
    %v154 = vpack.c.b16 %v130, %v128
    %v155 = vpack.c.b16 %v133, %v131
    %v156 = vpack.c.b16 %v134, %v132
    %v157 = vpack.c.b16 %v137, %v135
    %v158 = vpack.c.b16 %v138, %v136
    %v159 = vpack.c.b16 %v141, %v139
    %v160 = vpack.c.b16 %v142, %v140
    %v161 = vpack.c.b16 %v145, %v143
    %v162 = vpack.c.b16 %v146, %v144
    %v211 = vunpack.c.l.b16 %v60
    %v212 = vunpack.c.l.b16 %v61
    %v213 = vunpack.c.l.b16 %v62
    %v214 = vunpack.c.l.b16 %v63
    %v215 = vunpack.c.l.b16 %v64
    %v216 = vunpack.c.l.b16 %v65
    %v217 = vunpack.c.l.b16 %v66
    %v218 = vunpack.c.l.b16 %v67
    %v219 = vunpack.c.l.b16 %v68
    %v220 = vunpack.c.l.b16 %v69
    %v221 = vunpack.c.l.b16 %v70
    %v222 = vunpack.c.l.b16 %v71
    %v223 = vunpack.c.l.b16 %v72
    %v224 = vunpack.c.l.b16 %v73
    %v225 = vunpack.c.l.b16 %v74
    %v226 = vunpack.c.l.b16 %v75
    %v227 = vunpack.c.l.b16 %v76
    %v228 = vunpack.c.l.b16 %v77
    %v229 = vunpack.c.l.b16 %v78
    %v230 = vunpack.c.l.b16 %v79
    %v231 = vunpack.c.l.b16 %v80
    %v232 = vunpack.c.l.b16 %v81
    %v233 = vunpack.c.l.b16 %v82
    %v234 = vunpack.c.l.b16 %v83
    %v235 = vunpack.c.l.b16 %v84
    %v236 = vunpack.c.l.b16 %v85
    %v237 = vunpack.c.l.b16 %v86
    %v238 = vunpack.c.l.b16 %v87
    %v239 = vunpack.c.l.b16 %v88
    %v240 = vunpack.c.l.b16 %v89
    %v241 = vunpack.c.l.b16 %v90
    %v242 = vunpack.c.l.b16 %v91
    %v243 = vpack.c.b16 %v212, %v211
    %v244 = vpack.c.b16 %v214, %v213
    %v245 = vpack.c.b16 %v216, %v215
    %v246 = vpack.c.b16 %v218, %v217
    %v247 = vpack.c.b16 %v220, %v219
    %v248 = vpack.c.b16 %v222, %v221
    %v249 = vpack.c.b16 %v224, %v223
    %v250 = vpack.c.b16 %v226, %v225
    %v251 = vpack.c.b16 %v228, %v227
    %v252 = vpack.c.b16 %v230, %v229
    %v253 = vpack.c.b16 %v232, %v231
    %v254 = vpack.c.b16 %v234, %v233
    %v255 = vpack.c.b16 %v236, %v235
    %v256 = vpack.c.b16 %v238, %v237
    %v257 = vpack.c.b16 %v240, %v239
    %v258 = vpack.c.b16 %v242, %v241
    %275 = vmatprep.subr.bf16.mxu0 0
    %276 = vmatpush1.bf16.msra.mxu0 %v243
    %277 = vmatprep.subr.bf16.mxu0 0
    %278 = vmatpush1.bf16.msra.mxu0 %v244
    %279 = vmatprep.subr.bf16.mxu0 0
    %280 = vmatpush1.bf16.msra.mxu0 %v245
    %281 = vmatprep.subr.bf16.mxu0 0
    %282 = vmatpush1.bf16.msra.mxu0 %v246
    %283 = vmatprep.subr.bf16.mxu0 0
    %284 = vmatpush1.bf16.msra.mxu0 %v247
    %285 = vmatprep.subr.bf16.mxu0 0
    %286 = vmatpush1.bf16.msra.mxu0 %v248
    %287 = vmatprep.subr.bf16.mxu0 0
    %288 = vmatpush1.bf16.msra.mxu0 %v249
    %289 = vmatprep.subr.bf16.mxu0 0
    %290 = vmatpush1.bf16.msra.mxu0 %v250
    %291 = vmatprep.subr.bf16.mxu0 0
    %292 = vmatpush1.bf16.msra.mxu0 %v251
    %293 = vmatprep.subr.bf16.mxu0 0
    %294 = vmatpush1.bf16.msra.mxu0 %v252
    %295 = vmatprep.subr.bf16.mxu0 0
    %296 = vmatpush1.bf16.msra.mxu0 %v253
    %297 = vmatprep.subr.bf16.mxu0 0
    %298 = vmatpush1.bf16.msra.mxu0 %v254
    %299 = vmatprep.subr.bf16.mxu0 0
    %300 = vmatpush1.bf16.msra.mxu0 %v255
    %301 = vmatprep.subr.bf16.mxu0 0
    %302 = vmatpush1.bf16.msra.mxu0 %v256
    %303 = vmatprep.subr.bf16.mxu0 0
    %304 = vmatpush1.bf16.msra.mxu0 %v257
    %305 = vmatprep.subr.bf16.mxu0 0
    %306 = vmatpush1.bf16.msra.mxu0 %v258
    %307 = vmatprep.mubr.bf16.mxu0 %v148
    %308 = vmatmul.mubr.bf16.gmra.mrb[0].mxu0 %v147
    %v309 = vpop.f32.mrb[0].mxu0
    %v310 = vadd.f32 %v97, %v309
    %v311 = vpop.f32.mrb[0].mxu0
    %v312 = vpop.f32.mrb[0].mxu0
    %v313 = vadd.f32 %v97, %v312
    %v314 = vpop.f32.mrb[0].mxu0
    %315 = vmatprep.mubr.bf16.mxu0 %v150
    %316 = vmatmul.mubr.bf16.gmra.mrb[0].mxu0 %v149
    %v317 = vpop.f32.mrb[0].mxu0
    %v318 = vadd.f32 %v97, %v317
    %v319 = vpop.f32.mrb[0].mxu0
    %v320 = vpop.f32.mrb[0].mxu0
    %v321 = vadd.f32 %v97, %v320
    %v322 = vpop.f32.mrb[0].mxu0
    %323 = vmatprep.mubr.bf16.mxu0 %v152
    %324 = vmatmul.mubr.bf16.gmra.mrb[0].mxu0 %v151
    %v325 = vpop.f32.mrb[0].mxu0
    %v326 = vadd.f32 %v97, %v325
    %v327 = vpop.f32.mrb[0].mxu0
    %v328 = vpop.f32.mrb[0].mxu0
    %v329 = vadd.f32 %v97, %v328
    %v330 = vpop.f32.mrb[0].mxu0
    %331 = vmatprep.mubr.bf16.mxu0 %v154
    %332 = vmatmul.mubr.bf16.gmra.mrb[0].mxu0 %v153
    %v333 = vpop.f32.mrb[0].mxu0
    %v334 = vadd.f32 %v97, %v333
    %v335 = vpop.f32.mrb[0].mxu0
    %v336 = vpop.f32.mrb[0].mxu0
    %v337 = vadd.f32 %v97, %v336
    %v338 = vpop.f32.mrb[0].mxu0
    %339 = vmatprep.mubr.bf16.mxu0 %v156
    %340 = vmatmul.mubr.bf16.gmra.mrb[0].mxu0 %v155
    %v341 = vpop.f32.mrb[0].mxu0
    %v342 = vadd.f32 %v97, %v341
    %v343 = vpop.f32.mrb[0].mxu0
    %v344 = vpop.f32.mrb[0].mxu0
    %v345 = vadd.f32 %v97, %v344
    %v346 = vpop.f32.mrb[0].mxu0
    %347 = vmatprep.mubr.bf16.mxu0 %v158
    %348 = vmatmul.mubr.bf16.gmra.mrb[0].mxu0 %v157
    %v349 = vpop.f32.mrb[0].mxu0
    %v350 = vadd.f32 %v97, %v349
    %v351 = vpop.f32.mrb[0].mxu0
    %v352 = vpop.f32.mrb[0].mxu0
    %v353 = vadd.f32 %v97, %v352
    %v354 = vpop.f32.mrb[0].mxu0
    %355 = vmatprep.mubr.bf16.mxu0 %v160
    %356 = vmatmul.mubr.bf16.gmra.mrb[0].mxu0 %v159
    %v357 = vpop.f32.mrb[0].mxu0
    %v358 = vadd.f32 %v97, %v357
    %v359 = vpop.f32.mrb[0].mxu0
    %v360 = vpop.f32.mrb[0].mxu0
    %v361 = vadd.f32 %v97, %v360
    %v362 = vpop.f32.mrb[0].mxu0
    %363 = vmatprep.mubr.bf16.mxu0 %v162
    %364 = vmatmul.mubr.bf16.gmra.mrb[0].mxu0 %v161
    %v365 = vpop.f32.mrb[0].mxu0
    %v366 = vadd.f32 %v97, %v365
    %v367 = vpop.f32.mrb[0].mxu0
    %v368 = vpop.f32.mrb[0].mxu0
    %v369 = vadd.f32 %v97, %v368
    %v370 = vpop.f32.mrb[0].mxu0
    %371 = vdwg.mxu0
    %v372 = vmax.f32 %v310, 0.0
    %v373 = vmax.f32 %v313, 0.0
    %v374 = vmax.f32 %v318, 0.0
    %v375 = vmax.f32 %v321, 0.0
    %v376 = vmax.f32 %v326, 0.0
    %v377 = vmax.f32 %v329, 0.0
    %v378 = vmax.f32 %v334, 0.0
    %v379 = vmax.f32 %v337, 0.0
    %v380 = vmax.f32 %v342, 0.0
    %v381 = vmax.f32 %v345, 0.0
    %v382 = vmax.f32 %v350, 0.0
    %v383 = vmax.f32 %v353, 0.0
    %v384 = vmax.f32 %v358, 0.0
    %v385 = vmax.f32 %v361, 0.0
    %v386 = vmax.f32 %v366, 0.0
    %v387 = vmax.f32 %v369, 0.0
    %v388 = vpack.c.bf16 %v373, %v372
    %v389 = vpack.c.bf16 %v375, %v374
    %v390 = vpack.c.bf16 %v377, %v376
    %v391 = vpack.c.bf16 %v379, %v378
    %v392 = vpack.c.bf16 %v381, %v380
    %v393 = vpack.c.bf16 %v383, %v382
    %v394 = vpack.c.bf16 %v385, %v384
    %v395 = vpack.c.bf16 %v387, %v386
    %v404 = vunpack.c.l.b16 %v388
    %v405 = vunpack.c.h.b16 %v388
    %v406 = vunpack.c.l.b16 %v389
    %v407 = vunpack.c.h.b16 %v389
    %v408 = vunpack.c.l.b16 %v390
    %v409 = vunpack.c.h.b16 %v390
    %v410 = vunpack.c.l.b16 %v391
    %v411 = vunpack.c.h.b16 %v391
    %v412 = vunpack.c.l.b16 %v392
    %v413 = vunpack.c.h.b16 %v392
    %v414 = vunpack.c.l.b16 %v393
    %v415 = vunpack.c.h.b16 %v393
    %v416 = vunpack.c.l.b16 %v394
    %v417 = vunpack.c.h.b16 %v394
    %v418 = vunpack.c.l.b16 %v395
    %v419 = vunpack.c.h.b16 %v395
    %v420 = vpack.c.b16 %v404, %v404
    %v421 = vpack.c.b16 %v405, %v405
    %v422 = vpack.c.b16 %v406, %v406
    %v423 = vpack.c.b16 %v407, %v407
    %v424 = vpack.c.b16 %v408, %v408
    %v425 = vpack.c.b16 %v409, %v409
    %v426 = vpack.c.b16 %v410, %v410
    %v427 = vpack.c.b16 %v411, %v411
    %v428 = vpack.c.b16 %v412, %v412
    %v429 = vpack.c.b16 %v413, %v413
    %v430 = vpack.c.b16 %v414, %v414
    %v431 = vpack.c.b16 %v415, %v415
    %v432 = vpack.c.b16 %v416, %v416
    %v433 = vpack.c.b16 %v417, %v417
    %v434 = vpack.c.b16 %v418, %v418
    %v435 = vpack.c.b16 %v419, %v419
    %452 = vst [vmem:[#allocation7] sm:$0xf] %v420
    %453 = vst [vmem:[#allocation7 + $0x4] sm:$0xf] %v421
    %454 = vst [vmem:[#allocation7 + $0x8] sm:$0xf] %v422
    %455 = vst [vmem:[#allocation7 + $0xc] sm:$0xf] %v423
    %456 = vst [vmem:[#allocation7 + $0x10] sm:$0xf] %v424
    %457 = vst [vmem:[#allocation7 + $0x14] sm:$0xf] %v425
    %458 = vst [vmem:[#allocation7 + $0x18] sm:$0xf] %v426
    %459 = vst [vmem:[#allocation7 + $0x1c] sm:$0xf] %v427
    %460 = vst [vmem:[#allocation7 + $0x20] sm:$0xf] %v428
    %461 = vst [vmem:[#allocation7 + $0x24] sm:$0xf] %v429
    %462 = vst [vmem:[#allocation7 + $0x28] sm:$0xf] %v430
    %463 = vst [vmem:[#allocation7 + $0x2c] sm:$0xf] %v431
    %464 = vst [vmem:[#allocation7 + $0x30] sm:$0xf] %v432
    %465 = vst [vmem:[#allocation7 + $0x34] sm:$0xf] %v433
    %466 = vst [vmem:[#allocation7 + $0x38] sm:$0xf] %v434
    %467 = vst [vmem:[#allocation7 + $0x3c] sm:$0xf] %v435
    // Predicated region
    $region22: #{tpu_custom_call.1} parent=1 // pred_check
      _
    $region23: #{tpu_custom_call.1} parent=1 // pred_check_branch
      %469 = sbr.rel (0) target = $region25
    $region24: #{tpu_custom_call.1} parent=1 // pred_region
      %s471 = ssub.s32 1024, 1024
      %472 = vsyncadd [#allocation4], %s471
      %s473 = sshll.u32 [#allocation7], 4
      %s474 = int_to_ptr.vmem [resolvable:$true] %s473
      %479 = dma.vmem_to_hbm [thread:$0]  %s474, 1024, %s3, [#allocation4], 64, 64, 4
    $region25: #{tpu_custom_call.1} parent=1 // pred_fallthru
      _
    // Predicated region
    $region26: #{tpu_custom_call.1} parent=1 // pred_check
      _
    $region27: #{tpu_custom_call.1} parent=1 // pred_check_branch
      %481 = sbr.rel (0) target = $region29
    $region28: #{tpu_custom_call.1} parent=1 // pred_region
      %482 = dma.done [#allocation4], 1024
    $region29: #{tpu_custom_call.1} parent=1 // pred_fallthru
      _
    %483 = vsyncpa [#allocation3], 1
    %484 = vsyncpa [#allocation6], 1
    %485 = vsyncpa [#allocation4], 1

</llo_original>
